<compile_context>
chip_gen: v5e
topology: v5e:2x2
jax: 0.10.0
libtpu: 0.0.40
codegen_flags: <defaults>
</compile_context>

<pallas_src>
import math

import jax
import jax.numpy as jnp
from jax.experimental import pallas as pl
from jax.experimental.pallas import tpu as pltpu

LN_EPS = 1e-5  # torch.nn.LayerNorm default


def encoder_kernel(x_ref, cols_ref, a_ref, wf1_ref, bf1_ref, wf2_ref, o_ref):
    """Whole forward pass for the full batch in one invocation.

    Layout: rows = B*C (batch-major, channel-minor; fills the 8 sublanes),
            lanes = S = H*W (lane-dense).
      a_ref   : (B*C, B*C) block-diag channel-averaging matrix -> LN means.
      wf1_ref : (B*F, B*C) block-diag FF1 weight (W1^T replicated per batch).
      wf2_ref : (B*C, B*F) block-diag FF2 weight.
      cols_ref: (B*C, 6) columns = [attn_row, g1, be1, g2, be2, bf2_bias].
    """
    x = x_ref[...]                        # (BC, S) full 8-sublane slab
    A = a_ref[...]                        # (BC, BC)
    cols = cols_ref[...]                  # (BC, 6)

    row = cols[:, 0:1]                    # attention constant per (b, c)
    g1 = cols[:, 1:2]
    be1 = cols[:, 2:3]
    g2 = cols[:, 3:4]
    be2 = cols[:, 4:5]
    bf2 = cols[:, 5:6]

    # residual + LayerNorm 1 (channel mean via block-diag matmul, lane-dense)
    h = x + row
    mu = jnp.dot(A, h, preferred_element_type=jnp.float32)
    d = h - mu
    var = jnp.dot(A, d * d, preferred_element_type=jnp.float32)
    h1 = d * jax.lax.rsqrt(var + LN_EPS) * g1 + be1

    # feed-forward: one MXU matmul per layer for the whole batch
    f = jnp.dot(wf1_ref[...], h1, preferred_element_type=jnp.float32) + bf1_ref[...]
    f = jnp.maximum(f, 0.0)
    f = jnp.dot(wf2_ref[...], f, preferred_element_type=jnp.float32) + bf2

    # residual + LayerNorm 2
    h2 = f + h1
    mu2 = jnp.dot(A, h2, preferred_element_type=jnp.float32)
    d2 = h2 - mu2
    var2 = jnp.dot(A, d2 * d2, preferred_element_type=jnp.float32)
    o_ref[...] = (d2 * jax.lax.rsqrt(var2 + LN_EPS) * g2 + be2).astype(o_ref.dtype)


def transformer_encoder(x_nchw, labels_emd, params):
    B, C, H, W = x_nchw.shape
    S = H * W
    F = params["wf1"].shape[1]
    BC, BF = B * C, B * F

    # Attention DCE validity: exactly one label token per batch (KV length 1).
    assert labels_emd.ndim == 2 and labels_emd.shape[0] == B, (
        "attention elimination requires exactly one label embedding per batch")

    # --- attention path collapses to a per-(batch, channel) constant ---
    # softmax over a length-1 KV axis == 1  =>  output independent of q/Wq/Wk.
    v = labels_emd @ params["wv"] + params["bv"]          # (B, Dv)
    row = v @ params["w1"] + params["b1"]                 # (B, C)

    # --- (B*C, S) stacked channel-major layout: pure reshape of NCHW ---
    x_stacked = x_nchw.reshape(BC, S)

    # --- small per-row param slab: [row | g1 | be1 | g2 | be2 | bf2] ---
    def col_c(v1d):  # per-channel (C,) vector tiled over batch -> (B*C, 1)
        return jnp.tile(v1d.reshape(C), (B,)).reshape(BC, 1)

    cols = jnp.concatenate(
        [row.reshape(BC, 1),
         col_c(params["g1"]), col_c(params["be1"]),
         col_c(params["g2"]), col_c(params["be2"]),
         col_c(params["bf2"])], axis=1)                   # (BC, 6)

    eye_b = jnp.eye(B, dtype=jnp.float32)
    # block-diag channel-averaging matrix for LayerNorm statistics
    a_mat = jnp.kron(eye_b, jnp.full((C, C), 1.0 / C, jnp.float32))    # (BC, BC)
    # block-diag feed-forward weights (shared weight replicated per batch)
    wf1_bd = jnp.kron(eye_b, jnp.transpose(params["wf1"]))             # (BF, BC)
    wf2_bd = jnp.kron(eye_b, jnp.transpose(params["wf2"]))             # (BC, BF)
    bf1_bd = jnp.tile(params["bf1"].reshape(F), (B,)).reshape(BF, 1)   # (BF, 1)

    flops = (2 * BF * BC * S          # FF1
             + 2 * BC * BF * S        # FF2
             + 4 * 2 * BC * BC * S    # 4 LN-statistic matmuls
             + 12 * BC * S)           # elementwise
    bytes_accessed = 4 * (2 * BC * S + int(cols.size) + int(a_mat.size)
                          + int(wf1_bd.size) + int(wf2_bd.size) + int(bf1_bd.size))
    cost = pl.CostEstimate(flops=int(flops),
                           transcendentals=int(2 * BC * S),
                           bytes_accessed=int(bytes_accessed))

    def vmem_spec():
        return pl.BlockSpec(memory_space=pltpu.MemorySpace.VMEM)

    out = pl.pallas_call(
        encoder_kernel,
        out_shape=jax.ShapeDtypeStruct((BC, S), jnp.float32),
        in_specs=[vmem_spec() for _ in range(6)],
        out_specs=vmem_spec(),
        cost_estimate=cost,
    )(x_stacked, cols, a_mat, wf1_bd, bf1_bd, wf2_bd)

    return out.reshape(B, C, H, W)        # pure reshape back to NCHW


def init_params(key, img_channel, label_emd_size, q_k_size, v_size, f_size):
    """Deterministic synthetic params. Linear weights stored (in, out)."""
    ks = jax.random.split(key, 8)

    def lin(k, fan_in, fan_out):
        kw, kb = jax.random.split(k)
        bound = 1.0 / math.sqrt(fan_in)
        w = jax.random.uniform(kw, (fan_in, fan_out), jnp.float32, -bound, bound)
        b = jax.random.uniform(kb, (1, fan_out), jnp.float32, -bound, bound)
        return w, b

    wq, bq = lin(ks[0], img_channel, q_k_size)
    wk, bk = lin(ks[1], label_emd_size, q_k_size)
    wv, bv = lin(ks[2], label_emd_size, v_size)
    w1, b1 = lin(ks[3], v_size, img_channel)
    wf1, bf1 = lin(ks[4], img_channel, f_size)
    wf2, bf2 = lin(ks[5], f_size, img_channel)
    return dict(
        wq=wq, bq=bq, wk=wk, bk=bk, wv=wv, bv=bv,
        w1=w1, b1=b1,
        g1=jnp.ones((1, img_channel), jnp.float32),
        be1=jnp.zeros((1, img_channel), jnp.float32),
        wf1=wf1, bf1=bf1, wf2=wf2, bf2=bf2,
        g2=jnp.ones((1, img_channel), jnp.float32),
        be2=jnp.zeros((1, img_channel), jnp.float32),
    )


def reference(x_nchw, labels_emd, p):
    """Pure-JAX re-implementation of the full PyTorch forward (incl. q/k/softmax)."""
    B, C, H, W = x_nchw.shape
    xt = jnp.transpose(x_nchw, (0, 2, 3, 1))              # (B,H,W,C)
    xe = xt.reshape(B, H * W, C)
    q = xe @ p["wq"] + p["bq"]
    k = jnp.transpose((labels_emd @ p["wk"] + p["bk"])[:, None, :], (0, 2, 1))
    v = (labels_emd @ p["wv"] + p["bv"])[:, None, :]
    qk = jnp.matmul(q, k) / jnp.sqrt(jnp.float32(q.shape[2]))
    qkn = jax.nn.softmax(qk, axis=-1)
    z = jnp.matmul(qkn, v) @ p["w1"] + p["b1"]
    z = z.reshape(B, H, W, C)

    def ln(h, g, b):
        mu = jnp.mean(h, -1, keepdims=True)
        var = jnp.mean((h - mu) ** 2, -1, keepdims=True)
        return (h - mu) * jax.lax.rsqrt(var + LN_EPS) * g + b

    h1 = ln(z + xt, p["g1"], p["be1"])
    f = jnp.maximum(h1 @ p["wf1"] + p["bf1"], 0.0) @ p["wf2"] + p["bf2"]
    h2 = ln(f + h1, p["g2"], p["be2"])
    return jnp.transpose(h2, (0, 3, 1, 2))


if __name__ == "__main__":
    # small, module-consistent shapes
    B, C, H, W = 2, 4, 16, 16          # img_channel = 4
    label_emd_size, q_k_size, v_size, f_size = 8, 16, 16, 32

    key = jax.random.PRNGKey(0)
    kx, kl, kp = jax.random.split(key, 3)
    x = jax.random.normal(kx, (B, C, H, W), jnp.float32)
    labels_emd = jax.random.normal(kl, (B, label_emd_size), jnp.float32)
    params = init_params(kp, C, label_emd_size, q_k_size, v_size, f_size)

    out = transformer_encoder(x, labels_emd, params)
    out = jax.block_until_ready(out)

    ref = jax.block_until_ready(reference(x, labels_emd, params))
    assert out.shape == (B, C, H, W)
    assert jnp.allclose(out, ref, atol=1e-4, rtol=1e-4), "mismatch vs reference"

    print("KERNEL_OK")
</pallas_src>

<mosaic_0001>
module attributes {stable_mosaic.version = 11 : i64} {
  func.func @encoder_kernel(%arg0: memref<8x256xf32, #tpu.memory_space<vmem>>, %arg1: memref<8x6xf32, #tpu.memory_space<vmem>>, %arg2: memref<8x8xf32, #tpu.memory_space<vmem>>, %arg3: memref<64x8xf32, #tpu.memory_space<vmem>>, %arg4: memref<64x1xf32, #tpu.memory_space<vmem>>, %arg5: memref<8x64xf32, #tpu.memory_space<vmem>>, %arg6: memref<8x256xf32, #tpu.memory_space<vmem>>) attributes {dimension_semantics = [], scalar_prefetch = 0 : i64, scratch_operands = 0 : i64, tpu.core_type = #tpu.core_type<tc>} {
    %c0 = arith.constant 0 : index
    %c0_0 = arith.constant 0 : index
    %0 = vector.load %arg0[%c0, %c0_0] : memref<8x256xf32, #tpu.memory_space<vmem>>, vector<8x256xf32>
    %c0_1 = arith.constant 0 : index
    %c0_2 = arith.constant 0 : index
    %1 = vector.load %arg2[%c0_1, %c0_2] : memref<8x8xf32, #tpu.memory_space<vmem>>, vector<8x8xf32>
    %c0_3 = arith.constant 0 : index
    %c0_4 = arith.constant 0 : index
    %2 = vector.load %arg1[%c0_3, %c0_4] : memref<8x6xf32, #tpu.memory_space<vmem>>, vector<8x6xf32>
    %3 = vector.extract_strided_slice %2 {offsets = [0, 0], sizes = [8, 1], strides = [1, 1]} : vector<8x6xf32> to vector<8x1xf32>
    %4 = vector.extract_strided_slice %2 {offsets = [0, 1], sizes = [8, 1], strides = [1, 1]} : vector<8x6xf32> to vector<8x1xf32>
    %5 = vector.extract_strided_slice %2 {offsets = [0, 2], sizes = [8, 1], strides = [1, 1]} : vector<8x6xf32> to vector<8x1xf32>
    %6 = vector.extract_strided_slice %2 {offsets = [0, 3], sizes = [8, 1], strides = [1, 1]} : vector<8x6xf32> to vector<8x1xf32>
    %7 = vector.extract_strided_slice %2 {offsets = [0, 4], sizes = [8, 1], strides = [1, 1]} : vector<8x6xf32> to vector<8x1xf32>
    %8 = vector.extract_strided_slice %2 {offsets = [0, 5], sizes = [8, 1], strides = [1, 1]} : vector<8x6xf32> to vector<8x1xf32>
    %9 = vector.broadcast %3 : vector<8x1xf32> to vector<8x256xf32>
    %10 = arith.addf %0, %9 : vector<8x256xf32>
    %cst = arith.constant dense<0.000000e+00> : vector<8x256xf32>
    %11 = tpu.matmul %1, %10, %cst {dimension_numbers = #tpu.dot_dimension_numbers<[1], [0], [0], [1], [0, 0, 1, 1], [], []>} : vector<8x8xf32>, vector<8x256xf32>, vector<8x256xf32> -> vector<8x256xf32>
    %12 = arith.subf %10, %11 : vector<8x256xf32>
    %13 = arith.mulf %12, %12 : vector<8x256xf32>
    %cst_5 = arith.constant dense<0.000000e+00> : vector<8x256xf32>
    %14 = tpu.matmul %1, %13, %cst_5 {dimension_numbers = #tpu.dot_dimension_numbers<[1], [0], [0], [1], [0, 0, 1, 1], [], []>} : vector<8x8xf32>, vector<8x256xf32>, vector<8x256xf32> -> vector<8x256xf32>
    %cst_6 = arith.constant 9.99999974E-6 : f32
    %15 = vector.broadcast %cst_6 : f32 to vector<8x256xf32>
    %16 = arith.addf %14, %15 : vector<8x256xf32>
    %17 = math.rsqrt %16 : vector<8x256xf32>
    %18 = arith.mulf %12, %17 : vector<8x256xf32>
    %19 = vector.broadcast %4 : vector<8x1xf32> to vector<8x256xf32>
    %20 = arith.mulf %18, %19 : vector<8x256xf32>
    %21 = vector.broadcast %5 : vector<8x1xf32> to vector<8x256xf32>
    %22 = arith.addf %20, %21 : vector<8x256xf32>
    %c0_7 = arith.constant 0 : index
    %c0_8 = arith.constant 0 : index
    %23 = vector.load %arg3[%c0_7, %c0_8] : memref<64x8xf32, #tpu.memory_space<vmem>>, vector<64x8xf32>
    %cst_9 = arith.constant dense<0.000000e+00> : vector<64x256xf32>
    %24 = tpu.matmul %23, %22, %cst_9 {dimension_numbers = #tpu.dot_dimension_numbers<[1], [0], [0], [1], [0, 0, 1, 1], [], []>} : vector<64x8xf32>, vector<8x256xf32>, vector<64x256xf32> -> vector<64x256xf32>
    %c0_10 = arith.constant 0 : index
    %c0_11 = arith.constant 0 : index
    %25 = vector.load %arg4[%c0_10, %c0_11] : memref<64x1xf32, #tpu.memory_space<vmem>>, vector<64x1xf32>
    %26 = vector.broadcast %25 : vector<64x1xf32> to vector<64x256xf32>
    %27 = arith.addf %24, %26 : vector<64x256xf32>
    %cst_12 = arith.constant 0.000000e+00 : f32
    %28 = vector.broadcast %cst_12 : f32 to vector<64x256xf32>
    %29 = arith.maximumf %27, %28 : vector<64x256xf32>
    %c0_13 = arith.constant 0 : index
    %c0_14 = arith.constant 0 : index
    %30 = vector.load %arg5[%c0_13, %c0_14] : memref<8x64xf32, #tpu.memory_space<vmem>>, vector<8x64xf32>
    %cst_15 = arith.constant dense<0.000000e+00> : vector<8x256xf32>
    %31 = tpu.matmul %30, %29, %cst_15 {dimension_numbers = #tpu.dot_dimension_numbers<[1], [0], [0], [1], [0, 0, 1, 1], [], []>} : vector<8x64xf32>, vector<64x256xf32>, vector<8x256xf32> -> vector<8x256xf32>
    %32 = vector.broadcast %8 : vector<8x1xf32> to vector<8x256xf32>
    %33 = arith.addf %31, %32 : vector<8x256xf32>
    %34 = arith.addf %33, %22 : vector<8x256xf32>
    %cst_16 = arith.constant dense<0.000000e+00> : vector<8x256xf32>
    %35 = tpu.matmul %1, %34, %cst_16 {dimension_numbers = #tpu.dot_dimension_numbers<[1], [0], [0], [1], [0, 0, 1, 1], [], []>} : vector<8x8xf32>, vector<8x256xf32>, vector<8x256xf32> -> vector<8x256xf32>
    %36 = arith.subf %34, %35 : vector<8x256xf32>
    %37 = arith.mulf %36, %36 : vector<8x256xf32>
    %cst_17 = arith.constant dense<0.000000e+00> : vector<8x256xf32>
    %38 = tpu.matmul %1, %37, %cst_17 {dimension_numbers = #tpu.dot_dimension_numbers<[1], [0], [0], [1], [0, 0, 1, 1], [], []>} : vector<8x8xf32>, vector<8x256xf32>, vector<8x256xf32> -> vector<8x256xf32>
    %cst_18 = arith.constant 9.99999974E-6 : f32
    %39 = vector.broadcast %cst_18 : f32 to vector<8x256xf32>
    %40 = arith.addf %38, %39 : vector<8x256xf32>
    %41 = math.rsqrt %40 : vector<8x256xf32>
    %42 = arith.mulf %36, %41 : vector<8x256xf32>
    %43 = vector.broadcast %6 : vector<8x1xf32> to vector<8x256xf32>
    %44 = arith.mulf %42, %43 : vector<8x256xf32>
    %45 = vector.broadcast %7 : vector<8x1xf32> to vector<8x256xf32>
    %46 = arith.addf %44, %45 : vector<8x256xf32>
    %c0_19 = arith.constant 0 : index
    %c0_20 = arith.constant 0 : index
    %47 = vector.load %arg6[%c0_19, %c0_20] : memref<8x256xf32, #tpu.memory_space<vmem>>, vector<8x256xf32>
    tpu.vector_store %arg6[%c0_19, %c0_20], %46 {strides = array<i32>} : memref<8x256xf32, #tpu.memory_space<vmem>>, vector<8x256xf32>,
    return
  }
}

</mosaic_0001>

<llo_original>
// kernel: tpu_custom_call.1
$region0: #{tpu_custom_call.1}
  #allocation0 [shape = 'u32[]', space=smem, size = 0x4, offset = 0x4, fixed_abs, tag = 'smem constant byte address 0x4 - core index']
  #allocation1 [shape = 'u32[72,128]{1,0:T(1,128)}', space=vmem, size = 0x9000, scoped, tag = 'internal scratch']
  %s0 = inlined_call_operand.vmem [shape: f32[8,256], index: 0, kind: input, shape index: {}]
  %s1 = inlined_call_operand.vmem [shape: f32[8,6], index: 1, kind: input, shape index: {}]
  %s2 = inlined_call_operand.vmem [shape: f32[8,8], index: 2, kind: input, shape index: {}]
  %s3 = inlined_call_operand.vmem [shape: f32[64,8], index: 3, kind: input, shape index: {}]
  %s4 = inlined_call_operand.vmem [shape: f32[64,1], index: 4, kind: input, shape index: {}]
  %s5 = inlined_call_operand.vmem [shape: f32[8,64], index: 5, kind: input, shape index: {}]
  %s6 = inlined_call_operand.hbm [shape: f32[8,256], index: 6, kind: output, shape index: {}]
  %s7 = sld [smem:[#allocation0]]
  $region34: #{tpu_custom_call.1} parent=0
    _
  %s9 = ssub.s32 1, %s7
  %s10 = scalar_select 0, %s9, %s7
  $region1: #{tpu_custom_call.1} parent=0
    #allocation2 [shape = 'u8[8192]{0}', space=vmem, size = 0x2000, scoped, tag = 'output window, operand 0, single buffered']
    #allocation3 [shape = 's32[1]{0}', space=sflag, size = 0x4, scoped, tag = 'scoped memory for tpu_custom_call.1']
    %11 = vsyncpa [#allocation3], 0
    // Predicated region
    $region2: #{tpu_custom_call.1} parent=1 // pred_check
      _
    $region3: #{tpu_custom_call.1} parent=1 // pred_check_branch
      %13 = sbr.rel (0) target = $region5
    $region4: #{tpu_custom_call.1} parent=1 // pred_region
      _
    $region5: #{tpu_custom_call.1} parent=1 // pred_fallthru
      _
    // Predicated region
    $region6: #{tpu_custom_call.1} parent=1 // pred_check
      _
    $region7: #{tpu_custom_call.1} parent=1 // pred_check_branch
      %15 = sbr.rel (0) target = $region9
    $region8: #{tpu_custom_call.1} parent=1 // pred_region
      _
    $region9: #{tpu_custom_call.1} parent=1 // pred_fallthru
      _
    // Predicated region
    $region10: #{tpu_custom_call.1} parent=1 // pred_check
      _
    $region11: #{tpu_custom_call.1} parent=1 // pred_check_branch
      %17 = sbr.rel (0) target = $region13
    $region12: #{tpu_custom_call.1} parent=1 // pred_region
      _
    $region13: #{tpu_custom_call.1} parent=1 // pred_fallthru
      _
    // Predicated region
    $region14: #{tpu_custom_call.1} parent=1 // pred_check
      _
    $region15: #{tpu_custom_call.1} parent=1 // pred_check_branch
      %19 = sbr.rel (0) target = $region17
    $region16: #{tpu_custom_call.1} parent=1 // pred_region
      _
    $region17: #{tpu_custom_call.1} parent=1 // pred_fallthru
      _
    // Predicated region
    $region18: #{tpu_custom_call.1} parent=1 // pred_check
      _
    $region19: #{tpu_custom_call.1} parent=1 // pred_check_branch
      %21 = sbr.rel (0) target = $region21
    $region20: #{tpu_custom_call.1} parent=1 // pred_region
      _
    $region21: #{tpu_custom_call.1} parent=1 // pred_fallthru
      _
    // Predicated region
    $region22: #{tpu_custom_call.1} parent=1 // pred_check
      _
    $region23: #{tpu_custom_call.1} parent=1 // pred_check_branch
      %23 = sbr.rel (0) target = $region25
    $region24: #{tpu_custom_call.1} parent=1 // pred_region
      _
    $region25: #{tpu_custom_call.1} parent=1 // pred_fallthru
      _
    %v24 = vld [vmem:[%s0] sm:$0xff]
    %v25 = vld [vmem:[%s0 + $0x8] sm:$0xff]
    %v26 = vld [vmem:[%s2] sm:$0xff]
    %v27 = vld [vmem:[%s1] sm:$0xff]
    %29 = vset.pattern.permute.xlu0 0
    %30 = vperm.xlu0 %29, %v27
    %v31 = vpop.permute.xlu0 %30
    %v33 = vadd.f32 %v24, %v31
    %v34 = vadd.f32 %v25, %v31
    %vm35 = vcmask 64512
    %v37 = vsel %vm35, %v26, 0
    %39 = vmatpush.msra.mxu0 0.0
    %40 = vmatpush.msra.mxu0 0.0
    %41 = vmatpush.msra.mxu0 0.0
    %42 = vmatpush.msra.mxu0 0.0
    %43 = vmatpush.msra.mxu0 0.0
    %44 = vmatpush.msra.mxu0 0.0
    %45 = vmatpush.msra.mxu0 0.0
    %46 = vmatpush.msra.mxu0 0.0
    %47 = vmatpush.msra.mxu0 0.0
    %48 = vmatpush.msra.mxu0 0.0
    %49 = vmatpush.msra.mxu0 0.0
    %50 = vmatpush.msra.mxu0 0.0
    %51 = vmatpush.msra.mxu0 0.0
    %52 = vmatpush.msra.mxu0 0.0
    %53 = vmatpush.msra.mxu0 0.0
    %54 = vmatpush.msra.mxu0 %v33
    %55 = vmatmul.f32.gmra.mxu0 %v37
    %v56 = vpop.f32.mrf.mxu0
    %v57 = vadd.f32 0.0, %v56
    %58 = vdwg.mxu0
    %59 = vmatpush.msra.mxu0 0.0
    %60 = vmatpush.msra.mxu0 0.0
    %61 = vmatpush.msra.mxu0 0.0
    %62 = vmatpush.msra.mxu0 0.0
    %63 = vmatpush.msra.mxu0 0.0
    %64 = vmatpush.msra.mxu0 0.0
    %65 = vmatpush.msra.mxu0 0.0
    %66 = vmatpush.msra.mxu0 0.0
    %67 = vmatpush.msra.mxu0 0.0
    %68 = vmatpush.msra.mxu0 0.0
    %69 = vmatpush.msra.mxu0 0.0
    %70 = vmatpush.msra.mxu0 0.0
    %71 = vmatpush.msra.mxu0 0.0
    %72 = vmatpush.msra.mxu0 0.0
    %73 = vmatpush.msra.mxu0 0.0
    %74 = vmatpush.msra.mxu0 %v34
    %75 = vmatmul.f32.gmra.mxu0 %v37
    %v76 = vpop.f32.mrf.mxu0
    %v77 = vadd.f32 0.0, %v76
    %78 = vdwg.mxu0
    %v79 = vsub.f32 %v33, %v57
    %v80 = vsub.f32 %v34, %v77
    %v81 = vmul.f32 %v79, %v79
    %v82 = vmul.f32 %v80, %v80
    %83 = vmatpush.msra.mxu0 0.0
    %84 = vmatpush.msra.mxu0 0.0
    %85 = vmatpush.msra.mxu0 0.0
    %86 = vmatpush.msra.mxu0 0.0
    %87 = vmatpush.msra.mxu0 0.0
    %88 = vmatpush.msra.mxu0 0.0
    %89 = vmatpush.msra.mxu0 0.0
    %90 = vmatpush.msra.mxu0 0.0
    %91 = vmatpush.msra.mxu0 0.0
    %92 = vmatpush.msra.mxu0 0.0
    %93 = vmatpush.msra.mxu0 0.0
    %94 = vmatpush.msra.mxu0 0.0
    %95 = vmatpush.msra.mxu0 0.0
    %96 = vmatpush.msra.mxu0 0.0
    %97 = vmatpush.msra.mxu0 0.0
    %98 = vmatpush.msra.mxu0 %v81
    %99 = vmatmul.f32.gmra.mxu0 %v37
    %v100 = vpop.f32.mrf.mxu0
    %v101 = vadd.f32 1e-05, %v100
    %102 = vdwg.mxu0
    %103 = vmatpush.msra.mxu0 0.0
    %104 = vmatpush.msra.mxu0 0.0
    %105 = vmatpush.msra.mxu0 0.0
    %106 = vmatpush.msra.mxu0 0.0
    %107 = vmatpush.msra.mxu0 0.0
    %108 = vmatpush.msra.mxu0 0.0
    %109 = vmatpush.msra.mxu0 0.0
    %110 = vmatpush.msra.mxu0 0.0
    %111 = vmatpush.msra.mxu0 0.0
    %112 = vmatpush.msra.mxu0 0.0
    %113 = vmatpush.msra.mxu0 0.0
    %114 = vmatpush.msra.mxu0 0.0
    %115 = vmatpush.msra.mxu0 0.0
    %116 = vmatpush.msra.mxu0 0.0
    %117 = vmatpush.msra.mxu0 0.0
    %118 = vmatpush.msra.mxu0 %v82
    %119 = vmatmul.f32.gmra.mxu0 %v37
    %v120 = vpop.f32.mrf.mxu0
    %v121 = vadd.f32 1e-05, %v120
    %122 = vdwg.mxu0
    %v123 = vrsqrt.pop %v101
    %v124 = vmul.f32 %v123, %v101
    %v125 = vmul.f32 %v124, %v123
    %v126 = vmul.f32 0.5, %v125
    %v127 = vsub.f32 1.5, %v126
    %v128 = vmul.f32 %v123, %v127
    %vm129 = vweird.f32 %v101
    %vm130 = vweird.f32 %v123
    %vm131 = vmor %vm129, %vm130
    %v132 = vsel %vm131, %v123, %v128
    %v133 = vrsqrt.pop %v121
    %v134 = vmul.f32 %v133, %v121
    %v135 = vmul.f32 %v134, %v133
    %v136 = vmul.f32 0.5, %v135
    %v137 = vsub.f32 1.5, %v136
    %v138 = vmul.f32 %v133, %v137
    %vm139 = vweird.f32 %v121
    %vm140 = vweird.f32 %v133
    %vm141 = vmor %vm139, %vm140
    %v142 = vsel %vm141, %v133, %v138
    %v143 = vmul.f32 %v79, %v132
    %v144 = vmul.f32 %v80, %v142
    %145 = vset.pattern.permute.xlu0 1
    %146 = vperm.xlu0 %145, %v27
    %v147 = vpop.permute.xlu0 %146
    %v149 = vmul.f32 %v143, %v147
    %v150 = vmul.f32 %v144, %v147
    %151 = vset.pattern.permute.xlu0 2
    %152 = vperm.xlu0 %151, %v27
    %v153 = vpop.permute.xlu0 %152
    %v155 = vadd.f32 %v149, %v153
    %v156 = vadd.f32 %v150, %v153
    %v157 = vld [vmem:[%s3] sm:$0xff]
    %v158 = vld [vmem:[%s3 + $0x8] sm:$0xff]
    %v159 = vld [vmem:[%s3 + $0x10] sm:$0xff]
    %v160 = vld [vmem:[%s3 + $0x18] sm:$0xff]
    %v161 = vld [vmem:[%s3 + $0x20] sm:$0xff]
    %v162 = vld [vmem:[%s3 + $0x28] sm:$0xff]
    %v163 = vld [vmem:[%s3 + $0x30] sm:$0xff]
    %v164 = vld [vmem:[%s3 + $0x38] sm:$0xff]
    %v165 = vld [vmem:[%s4] sm:$0xff]
    %v166 = vld [vmem:[%s4 + $0x8] sm:$0xff]
    %v167 = vld [vmem:[%s4 + $0x10] sm:$0xff]
    %v168 = vld [vmem:[%s4 + $0x18] sm:$0xff]
    %v169 = vld [vmem:[%s4 + $0x20] sm:$0xff]
    %v170 = vld [vmem:[%s4 + $0x28] sm:$0xff]
    %v171 = vld [vmem:[%s4 + $0x30] sm:$0xff]
    %v172 = vld [vmem:[%s4 + $0x38] sm:$0xff]
    %174 = vset.pattern.permute.xlu0 0
    %175 = vperm.xlu0 %174, %v165
    %v176 = vpop.permute.xlu0 %175
    %179 = vset.pattern.permute.xlu0 0
    %180 = vperm.xlu0 %179, %v166
    %v181 = vpop.permute.xlu0 %180
    %184 = vset.pattern.permute.xlu0 0
    %185 = vperm.xlu0 %184, %v167
    %v186 = vpop.permute.xlu0 %185
    %189 = vset.pattern.permute.xlu0 0
    %190 = vperm.xlu0 %189, %v168
    %v191 = vpop.permute.xlu0 %190
    %194 = vset.pattern.permute.xlu0 0
    %195 = vperm.xlu0 %194, %v169
    %v196 = vpop.permute.xlu0 %195
    %199 = vset.pattern.permute.xlu0 0
    %200 = vperm.xlu0 %199, %v170
    %v201 = vpop.permute.xlu0 %200
    %204 = vset.pattern.permute.xlu0 0
    %205 = vperm.xlu0 %204, %v171
    %v206 = vpop.permute.xlu0 %205
    %209 = vset.pattern.permute.xlu0 0
    %210 = vperm.xlu0 %209, %v172
    %v211 = vpop.permute.xlu0 %210
    %v214 = vsel %vm35, %v157, 0
    %v217 = vsel %vm35, %v158, 0
    %v220 = vsel %vm35, %v159, 0
    %v223 = vsel %vm35, %v160, 0
    %v226 = vsel %vm35, %v161, 0
    %v229 = vsel %vm35, %v162, 0
    %v232 = vsel %vm35, %v163, 0
    %v235 = vsel %vm35, %v164, 0
    %237 = vmatpush.msra.mxu0 0.0
    %238 = vmatpush.msra.mxu0 0.0
    %239 = vmatpush.msra.mxu0 0.0
    %240 = vmatpush.msra.mxu0 0.0
    %241 = vmatpush.msra.mxu0 0.0
    %242 = vmatpush.msra.mxu0 0.0
    %243 = vmatpush.msra.mxu0 0.0
    %244 = vmatpush.msra.mxu0 0.0
    %245 = vmatpush.msra.mxu0 0.0
    %246 = vmatpush.msra.mxu0 0.0
    %247 = vmatpush.msra.mxu0 0.0
    %248 = vmatpush.msra.mxu0 0.0
    %249 = vmatpush.msra.mxu0 0.0
    %250 = vmatpush.msra.mxu0 0.0
    %251 = vmatpush.msra.mxu0 0.0
    %252 = vmatpush.msra.mxu0 %v155
    %253 = vmatmul.f32.gmra.mxu0 %v214
    %v254 = vpop.f32.mrf.mxu0
    %v255 = vadd.f32 %v176, %v254
    %256 = vmatmul.f32.gmra.mxu0 %v217
    %v257 = vpop.f32.mrf.mxu0
    %v258 = vadd.f32 %v181, %v257
    %259 = vmatmul.f32.gmra.mxu0 %v220
    %v260 = vpop.f32.mrf.mxu0
    %v261 = vadd.f32 %v186, %v260
    %262 = vmatmul.f32.gmra.mxu0 %v223
    %v263 = vpop.f32.mrf.mxu0
    %v264 = vadd.f32 %v191, %v263
    %265 = vmatmul.f32.gmra.mxu0 %v226
    %v266 = vpop.f32.mrf.mxu0
    %v267 = vadd.f32 %v196, %v266
    %268 = vmatmul.f32.gmra.mxu0 %v229
    %v269 = vpop.f32.mrf.mxu0
    %v270 = vadd.f32 %v201, %v269
    %271 = vmatmul.f32.gmra.mxu0 %v232
    %v272 = vpop.f32.mrf.mxu0
    %v273 = vadd.f32 %v206, %v272
    %274 = vmatmul.f32.gmra.mxu0 %v235
    %v275 = vpop.f32.mrf.mxu0
    %v276 = vadd.f32 %v211, %v275
    %277 = vdwg.mxu0
    %278 = vmatpush.msra.mxu0 0.0
    %279 = vmatpush.msra.mxu0 0.0
    %280 = vmatpush.msra.mxu0 0.0
    %281 = vmatpush.msra.mxu0 0.0
    %282 = vmatpush.msra.mxu0 0.0
    %283 = vmatpush.msra.mxu0 0.0
    %284 = vmatpush.msra.mxu0 0.0
    %285 = vmatpush.msra.mxu0 0.0
    %286 = vmatpush.msra.mxu0 0.0
    %287 = vmatpush.msra.mxu0 0.0
    %288 = vmatpush.msra.mxu0 0.0
    %289 = vmatpush.msra.mxu0 0.0
    %290 = vmatpush.msra.mxu0 0.0
    %291 = vmatpush.msra.mxu0 0.0
    %292 = vmatpush.msra.mxu0 0.0
    %293 = vmatpush.msra.mxu0 %v156
    %294 = vmatmul.f32.gmra.mxu0 %v214
    %v295 = vpop.f32.mrf.mxu0
    %v296 = vadd.f32 %v176, %v295
    %297 = vmatmul.f32.gmra.mxu0 %v217
    %v298 = vpop.f32.mrf.mxu0
    %v299 = vadd.f32 %v181, %v298
    %300 = vmatmul.f32.gmra.mxu0 %v220
    %v301 = vpop.f32.mrf.mxu0
    %v302 = vadd.f32 %v186, %v301
    %303 = vmatmul.f32.gmra.mxu0 %v223
    %v304 = vpop.f32.mrf.mxu0
    %v305 = vadd.f32 %v191, %v304
    %306 = vmatmul.f32.gmra.mxu0 %v226
    %v307 = vpop.f32.mrf.mxu0
    %v308 = vadd.f32 %v196, %v307
    %309 = vmatmul.f32.gmra.mxu0 %v229
    %v310 = vpop.f32.mrf.mxu0
    %v311 = vadd.f32 %v201, %v310
    %312 = vmatmul.f32.gmra.mxu0 %v232
    %v313 = vpop.f32.mrf.mxu0
    %v314 = vadd.f32 %v206, %v313
    %315 = vmatmul.f32.gmra.mxu0 %v235
    %v316 = vpop.f32.mrf.mxu0
    %v317 = vadd.f32 %v211, %v316
    %318 = vdwg.mxu0
    %v319 = vmax.f32 %v255, 0.0
    %v320 = vmax.f32 %v296, 0.0
    %v321 = vmax.f32 %v258, 0.0
    %v322 = vmax.f32 %v299, 0.0
    %v323 = vmax.f32 %v261, 0.0
    %v324 = vmax.f32 %v302, 0.0
    %v325 = vmax.f32 %v264, 0.0
    %v326 = vmax.f32 %v305, 0.0
    %v327 = vmax.f32 %v267, 0.0
    %v328 = vmax.f32 %v308, 0.0
    %v329 = vmax.f32 %v270, 0.0
    %v330 = vmax.f32 %v311, 0.0
    %v331 = vmax.f32 %v273, 0.0
    %v332 = vmax.f32 %v314, 0.0
    %v333 = vmax.f32 %v276, 0.0
    %v334 = vmax.f32 %v317, 0.0
    %v335 = vld [vmem:[%s5] sm:$0xff]
    %336 = vset.pattern.permute.xlu0 5
    %337 = vperm.xlu0 %336, %v27
    %v338 = vpop.permute.xlu0 %337
    %vm340 = vcmask 523264
    %v342 = vsel %vm340, %v335, 0
    %344 = vmatpush.msra.mxu0 0.0
    %345 = vmatpush.msra.mxu0 0.0
    %346 = vmatpush.msra.mxu0 0.0
    %347 = vmatpush.msra.mxu0 0.0
    %348 = vmatpush.msra.mxu0 0.0
    %349 = vmatpush.msra.mxu0 0.0
    %350 = vmatpush.msra.mxu0 0.0
    %351 = vmatpush.msra.mxu0 0.0
    %352 = vmatpush.msra.mxu0 %v333
    %353 = vmatpush.msra.mxu0 %v331
    %354 = vmatpush.msra.mxu0 %v329
    %355 = vmatpush.msra.mxu0 %v327
    %356 = vmatpush.msra.mxu0 %v325
    %357 = vmatpush.msra.mxu0 %v323
    %358 = vmatpush.msra.mxu0 %v321
    %359 = vmatpush.msra.mxu0 %v319
    %360 = vmatmul.f32.gmra.mxu0 %v342
    %v361 = vpop.f32.mrf.mxu0
    %v362 = vadd.f32 %v338, %v361
    %363 = vdwg.mxu0
    %364 = vmatpush.msra.mxu0 0.0
    %365 = vmatpush.msra.mxu0 0.0
    %366 = vmatpush.msra.mxu0 0.0
    %367 = vmatpush.msra.mxu0 0.0
    %368 = vmatpush.msra.mxu0 0.0
    %369 = vmatpush.msra.mxu0 0.0
    %370 = vmatpush.msra.mxu0 0.0
    %371 = vmatpush.msra.mxu0 0.0
    %372 = vmatpush.msra.mxu0 %v334
    %373 = vmatpush.msra.mxu0 %v332
    %374 = vmatpush.msra.mxu0 %v330
    %375 = vmatpush.msra.mxu0 %v328
    %376 = vmatpush.msra.mxu0 %v326
    %377 = vmatpush.msra.mxu0 %v324
    %378 = vmatpush.msra.mxu0 %v322
    %379 = vmatpush.msra.mxu0 %v320
    %380 = vmatmul.f32.gmra.mxu0 %v342
    %v381 = vpop.f32.mrf.mxu0
    %v382 = vadd.f32 %v338, %v381
    %383 = vdwg.mxu0
    %v384 = vadd.f32 %v362, %v155
    %v385 = vadd.f32 %v382, %v156
    %386 = vmatpush.msra.mxu0 0.0
    %387 = vmatpush.msra.mxu0 0.0
    %388 = vmatpush.msra.mxu0 0.0
    %389 = vmatpush.msra.mxu0 0.0
    %390 = vmatpush.msra.mxu0 0.0
    %391 = vmatpush.msra.mxu0 0.0
    %392 = vmatpush.msra.mxu0 0.0
    %393 = vmatpush.msra.mxu0 0.0
    %394 = vmatpush.msra.mxu0 0.0
    %395 = vmatpush.msra.mxu0 0.0
    %396 = vmatpush.msra.mxu0 0.0
    %397 = vmatpush.msra.mxu0 0.0
    %398 = vmatpush.msra.mxu0 0.0
    %399 = vmatpush.msra.mxu0 0.0
    %400 = vmatpush.msra.mxu0 0.0
    %401 = vmatpush.msra.mxu0 %v384
    %402 = vmatmul.f32.gmra.mxu0 %v37
    %v403 = vpop.f32.mrf.mxu0
    %v404 = vadd.f32 0.0, %v403
    %405 = vdwg.mxu0
    %406 = vmatpush.msra.mxu0 0.0
    %407 = vmatpush.msra.mxu0 0.0
    %408 = vmatpush.msra.mxu0 0.0
    %409 = vmatpush.msra.mxu0 0.0
    %410 = vmatpush.msra.mxu0 0.0
    %411 = vmatpush.msra.mxu0 0.0
    %412 = vmatpush.msra.mxu0 0.0
    %413 = vmatpush.msra.mxu0 0.0
    %414 = vmatpush.msra.mxu0 0.0
    %415 = vmatpush.msra.mxu0 0.0
    %416 = vmatpush.msra.mxu0 0.0
    %417 = vmatpush.msra.mxu0 0.0
    %418 = vmatpush.msra.mxu0 0.0
    %419 = vmatpush.msra.mxu0 0.0
    %420 = vmatpush.msra.mxu0 0.0
    %421 = vmatpush.msra.mxu0 %v385
    %422 = vmatmul.f32.gmra.mxu0 %v37
    %v423 = vpop.f32.mrf.mxu0
    %v424 = vadd.f32 0.0, %v423
    %425 = vdwg.mxu0
    %v426 = vsub.f32 %v384, %v404
    %v427 = vsub.f32 %v385, %v424
    %v428 = vmul.f32 %v426, %v426
    %v429 = vmul.f32 %v427, %v427
    %430 = vmatpush.msra.mxu0 0.0
    %431 = vmatpush.msra.mxu0 0.0
    %432 = vmatpush.msra.mxu0 0.0
    %433 = vmatpush.msra.mxu0 0.0
    %434 = vmatpush.msra.mxu0 0.0
    %435 = vmatpush.msra.mxu0 0.0
    %436 = vmatpush.msra.mxu0 0.0
    %437 = vmatpush.msra.mxu0 0.0
    %438 = vmatpush.msra.mxu0 0.0
    %439 = vmatpush.msra.mxu0 0.0
    %440 = vmatpush.msra.mxu0 0.0
    %441 = vmatpush.msra.mxu0 0.0
    %442 = vmatpush.msra.mxu0 0.0
    %443 = vmatpush.msra.mxu0 0.0
    %444 = vmatpush.msra.mxu0 0.0
    %445 = vmatpush.msra.mxu0 %v428
    %446 = vmatmul.f32.gmra.mxu0 %v37
    %v447 = vpop.f32.mrf.mxu0
    %v448 = vadd.f32 1e-05, %v447
    %449 = vdwg.mxu0
    %450 = vmatpush.msra.mxu0 0.0
    %451 = vmatpush.msra.mxu0 0.0
    %452 = vmatpush.msra.mxu0 0.0
    %453 = vmatpush.msra.mxu0 0.0
    %454 = vmatpush.msra.mxu0 0.0
    %455 = vmatpush.msra.mxu0 0.0
    %456 = vmatpush.msra.mxu0 0.0
    %457 = vmatpush.msra.mxu0 0.0
    %458 = vmatpush.msra.mxu0 0.0
    %459 = vmatpush.msra.mxu0 0.0
    %460 = vmatpush.msra.mxu0 0.0
    %461 = vmatpush.msra.mxu0 0.0
    %462 = vmatpush.msra.mxu0 0.0
    %463 = vmatpush.msra.mxu0 0.0
    %464 = vmatpush.msra.mxu0 0.0
    %465 = vmatpush.msra.mxu0 %v429
    %466 = vmatmul.f32.gmra.mxu0 %v37
    %v467 = vpop.f32.mrf.mxu0
    %v468 = vadd.f32 1e-05, %v467
    %469 = vdwg.mxu0
    %v470 = vrsqrt.pop %v448
    %v471 = vmul.f32 %v470, %v448
    %v472 = vmul.f32 %v471, %v470
    %v473 = vmul.f32 0.5, %v472
    %v474 = vsub.f32 1.5, %v473
    %v475 = vmul.f32 %v470, %v474
    %vm476 = vweird.f32 %v448
    %vm477 = vweird.f32 %v470
    %vm478 = vmor %vm476, %vm477
    %v479 = vsel %vm478, %v470, %v475
    %v480 = vrsqrt.pop %v468
    %v481 = vmul.f32 %v480, %v468
    %v482 = vmul.f32 %v481, %v480
    %v483 = vmul.f32 0.5, %v482
    %v484 = vsub.f32 1.5, %v483
    %v485 = vmul.f32 %v480, %v484
    %vm486 = vweird.f32 %v468
    %vm487 = vweird.f32 %v480
    %vm488 = vmor %vm486, %vm487
    %v489 = vsel %vm488, %v480, %v485
    %v490 = vmul.f32 %v426, %v479
    %v491 = vmul.f32 %v427, %v489
    %492 = vset.pattern.permute.xlu0 3
    %493 = vperm.xlu0 %492, %v27
    %v494 = vpop.permute.xlu0 %493
    %v496 = vmul.f32 %v490, %v494
    %v497 = vmul.f32 %v491, %v494
    %498 = vset.pattern.permute.xlu0 4
    %499 = vperm.xlu0 %498, %v27
    %v500 = vpop.permute.xlu0 %499
    %v502 = vadd.f32 %v496, %v500
    %v503 = vadd.f32 %v497, %v500
    %504 = vst [vmem:[#allocation2] sm:$0xff] %v502
    %505 = vst [vmem:[#allocation2 + $0x8] sm:$0xff] %v503
    // Predicated region
    $region26: #{tpu_custom_call.1} parent=1 // pred_check
      _
    $region27: #{tpu_custom_call.1} parent=1 // pred_check_branch
      %507 = sbr.rel (0) target = $region29
    $region28: #{tpu_custom_call.1} parent=1 // pred_region
      %509 = vsyncadd [#allocation3], 0
      %s511 = sshll.u32 [#allocation2], 4
      %s512 = int_to_ptr.vmem [resolvable:$true] %s511
      %s513 = sshll.u32 %s6, 4
      %s514 = int_to_ptr.hbm [resolvable:$true] %s513
      %516 = dma.vmem_to_hbm [thread:$0]  %s512, 256, %s514, [#allocation3]
    $region29: #{tpu_custom_call.1} parent=1 // pred_fallthru
      _
    // Predicated region
    $region30: #{tpu_custom_call.1} parent=1 // pred_check
      _
    $region31: #{tpu_custom_call.1} parent=1 // pred_check_branch
      %518 = sbr.rel (0) target = $region33
    $region32: #{tpu_custom_call.1} parent=1 // pred_region
      %520 = dma.done [#allocation3], 256
    $region33: #{tpu_custom_call.1} parent=1 // pred_fallthru
      _
    %521 = vsyncpa [#allocation3], 1

</llo_original>
